<compile_context>
chip_gen: v6e
topology: v6e:2x2x1
jax: 0.10.0
libtpu: 0.0.40
codegen_flags: <defaults>
</compile_context>

<pallas_src>
import functools

import jax
import jax.numpy as jnp
from jax.experimental import pallas as pl
from jax.experimental.pallas import tpu as pltpu

BN_EPS = 1e-5
OUT_PAD = 128            # lane-dense fused-output width


def _round_up(x, m):
    return ((x + m - 1) // m) * m


def _pad2(a, rows, cols):
    return jnp.pad(a, ((0, rows - a.shape[0]), (0, cols - a.shape[1])))


def _fold_bn(w1, b1, bn):
    """Fold eval-mode BatchNorm1d into the preceding Linear."""
    scale = bn["gamma"] * jax.lax.rsqrt(bn["var"] + BN_EPS)
    return w1 * scale, (b1 - bn["mean"]) * scale + bn["beta"]


# --------------------------------------------------------------------------
# Kernel 1: one GIN layer, row-tiled over S.
# --------------------------------------------------------------------------
def gin_layer_kernel(s_ref, h_ref, w1_ref, b1_ref, w2_ref, b2_ref, out_ref, *,
                     residual):
    tm = out_ref.shape[0]
    # Neighbor + self aggregation: S[row block] @ h  (S streamed as bf16).
    agg = jnp.dot(s_ref[...].astype(jnp.float32), h_ref[...],
                  preferred_element_type=jnp.float32)
    # GIN MLP: Linear (+ folded eval-BN) -> ReLU -> Linear.  Dropout = identity.
    z = jnp.dot(agg, w1_ref[...], preferred_element_type=jnp.float32) + b1_ref[...]
    z = jnp.maximum(z, 0.0)
    z = jnp.dot(z, w2_ref[...], preferred_element_type=jnp.float32) + b2_ref[...]
    if residual:
        row0 = pl.multiple_of(pl.program_id(0) * tm, tm)
        z = z + h_ref[pl.ds(row0, tm), :]
    out_ref[...] = z


def _gin_layer(s_bf16, h_in, w1, b1, w2, b2, *, residual, tm):
    n_pad = s_bf16.shape[0]
    d_in = h_in.shape[1]
    h_dim = w1.shape[1]
    grid = (n_pad // tm,)
    kernel = functools.partial(gin_layer_kernel, residual=residual)
    return pl.pallas_call(
        kernel,
        out_shape=jax.ShapeDtypeStruct((n_pad, h_dim), jnp.float32),
        grid=grid,
        in_specs=[
            pl.BlockSpec((tm, n_pad), lambda i: (i, 0)),       # S row block (bf16)
            pl.BlockSpec((n_pad, d_in), lambda i: (0, 0)),     # full h (resident)
            pl.BlockSpec((d_in, h_dim), lambda i: (0, 0)),     # W1 (BN folded)
            pl.BlockSpec((1, h_dim), lambda i: (0, 0)),        # b1 (BN folded)
            pl.BlockSpec((h_dim, h_dim), lambda i: (0, 0)),    # W2
            pl.BlockSpec((1, h_dim), lambda i: (0, 0)),        # b2
        ],
        out_specs=pl.BlockSpec((tm, h_dim), lambda i: (i, 0)),
        compiler_params=pltpu.CompilerParams(
            dimension_semantics=("parallel",),      # megacore split on v7x
            # tiles sized to fit a 32 MiB scoped budget on every generation
            vmem_limit_bytes=32 << 20,
        ),
    )(s_bf16, h_in, w1, b1, w2, b2)


# --------------------------------------------------------------------------
# Kernel 2: pooling (mean/max/add) + fused classifier/attention heads.
# --------------------------------------------------------------------------
def pool_head_kernel(mask_ref, cnt_ref, batch_ref, h_ref,
                     whm_ref, whx_ref, wha_ref,
                     bm_ref, bx_ref, ba_ref, bat1_ref, wat2_ref, bat2_ref,
                     out_ref, maxg_ref, *,
                     num_graphs, num_classes, hidden_pad, out_pad):
    h3 = h_ref[...]                                  # [N_pad, H_pad]
    mask = mask_ref[...]                             # [G, N_pad]
    cnt = cnt_ref[...]                               # [G, 1]
    batch_col = batch_ref[...]                       # [N_pad, 1] int32

    # add / mean pooling as a single dense matmul.
    add_repr = jnp.dot(mask, h3, preferred_element_type=jnp.float32)   # [G, H_pad]
    mean_repr = add_repr * (1.0 / jnp.maximum(cnt, 1.0))               # empty-graph safe

    # max pooling: per-graph masked max — peak intermediate is [N_pad, H_pad].
    neg = jnp.finfo(jnp.float32).min

    @pl.loop(0, num_graphs)
    def _(g):
        masked = jnp.where(batch_col == g, h3, neg)                    # [N_pad, H_pad]
        maxg_ref[pl.ds(g, 1), :] = jnp.max(masked, axis=0, keepdims=True)

    max_repr = maxg_ref[0:num_graphs, :]                               # [G, H_pad]
    max_repr = jnp.where(cnt > 0.0, max_repr, 0.0)                     # empty-graph guard

    # Fused heads: each pooled repr hits ONE [H_pad, H_pad + C] matmul whose
    # columns are [attention block | classifier].
    hp, cc = hidden_pad, num_classes
    hm = jnp.dot(mean_repr, whm_ref[...], preferred_element_type=jnp.float32)
    hx = jnp.dot(max_repr,  whx_ref[...], preferred_element_type=jnp.float32)
    ha = jnp.dot(add_repr,  wha_ref[...], preferred_element_type=jnp.float32)

    lm = hm[:, hp:hp + cc] + bm_ref[...]
    lx = hx[:, hp:hp + cc] + bx_ref[...]
    la = ha[:, hp:hp + cc] + ba_ref[...]

    att = jnp.maximum(hm[:, :hp] + hx[:, :hp] + ha[:, :hp] + bat1_ref[...], 0.0)
    logit = jnp.dot(att, wat2_ref[...], preferred_element_type=jnp.float32) + bat2_ref[...]
    logit = logit - jnp.max(logit, axis=1, keepdims=True)
    e = jnp.exp(logit)
    aw = e / jnp.sum(e, axis=1, keepdims=True)                         # softmax(dim=1), [G, 3]

    ens = aw[:, 0:1] * lm + aw[:, 1:2] * lx + aw[:, 2:3] * la

    # One lane-dense fused output: [ens | lm | lx | la | aw | zero pad].
    pad = jnp.zeros((ens.shape[0], out_pad - 4 * cc - 3), jnp.float32)
    out_ref[...] = jnp.concatenate([ens, lm, lx, la, aw, pad], axis=1)


# --------------------------------------------------------------------------
# Parameters (synthetic, matching the torch module's shapes).
# --------------------------------------------------------------------------
def init_params(key, input_dim, hidden_dim, num_classes):
    ks = iter(jax.random.split(key, 40))

    def lin(fan_in, fan_out):
        w = jax.random.normal(next(ks), (fan_in, fan_out), jnp.float32) * 0.1
        b = jax.random.normal(next(ks), (1, fan_out), jnp.float32) * 0.1
        return w, b

    def bn(dim):
        return dict(gamma=jnp.ones((1, dim), jnp.float32),
                    beta=jnp.zeros((1, dim), jnp.float32),
                    mean=jnp.zeros((1, dim), jnp.float32),
                    var=jnp.ones((1, dim), jnp.float32))

    params = {"emb": jax.random.normal(next(ks), (1, input_dim), jnp.float32) * 0.1}
    convs = []
    for d_in in (input_dim, hidden_dim, hidden_dim):
        w1, b1 = lin(d_in, hidden_dim)
        w2, b2 = lin(hidden_dim, hidden_dim)
        convs.append(dict(W1=w1, b1=b1, bn=bn(hidden_dim), W2=w2, b2=b2))
    params["convs"] = convs
    for name in ("mean", "max", "add"):
        params[f"cls_{name}"] = lin(hidden_dim, num_classes)
    wat1, bat1 = lin(3 * hidden_dim, hidden_dim)
    wat2, bat2 = lin(hidden_dim, 3)
    params["att"] = dict(W1=wat1, b1=bat1, W2=wat2, b2=bat2)
    return params


# --------------------------------------------------------------------------
# Forward wrapper.
# --------------------------------------------------------------------------
def adaptive_ensemble_gnn(params, x_idx, edge_index, batch, num_graphs, num_classes):
    n = x_idx.shape[0]
    d_in = params["emb"].shape[1]
    h = params["convs"][0]["W1"].shape[1]
    c = num_classes
    g = num_graphs

    # Lane-padded working sizes.
    h_pad = _round_up(h, 128)
    din_pad = _round_up(d_in, 128)
    if n <= 512:
        n_pad = _round_up(n, 128)
        tm = n_pad
    else:
        tm = 512
        n_pad = _round_up(n, tm)

    # --- glue (one-time XLA ops outside the kernels) ---
    x = params["emb"][x_idx].astype(jnp.float32)                       # [N, Din]
    x = _pad2(x, n_pad, din_pad)

    src, dst = edge_index[0], edge_index[1]
    a_dense = jnp.zeros((n, n), jnp.float32).at[dst, src].add(1.0)     # A[i,j] = #edges j->i
    s = a_dense + jnp.eye(n, dtype=jnp.float32)                        # S = A + (1+eps)I, eps=0
    s = _pad2(s, n_pad, n_pad).astype(jnp.bfloat16)                    # exact: small int counts

    # Fold eval BatchNorm into the first Linear of each GIN MLP; pad weights.
    convs = []
    for li, cv in enumerate(params["convs"]):
        w1f, b1f = _fold_bn(cv["W1"], cv["b1"], cv["bn"])
        in_pad = din_pad if li == 0 else h_pad
        convs.append((_pad2(w1f, in_pad, h_pad), _pad2(b1f, 1, h_pad),
                      _pad2(cv["W2"], h_pad, h_pad), _pad2(cv["b2"], 1, h_pad)))

    # --- three GIN layers (row-tiled Pallas kernel) ---
    h1 = _gin_layer(s, x,  *convs[0], residual=False, tm=tm)
    h2 = _gin_layer(s, h1, *convs[1], residual=True,  tm=tm)
    h3 = _gin_layer(s, h2, *convs[2], residual=True,  tm=tm)

    # --- pooling tables (padded nodes get invalid graph id G -> excluded) ---
    batch_pad = jnp.concatenate(
        [batch.astype(jnp.int32), jnp.full((n_pad - n,), g, jnp.int32)])
    mask = (batch_pad[None, :] == jnp.arange(g)[:, None]).astype(jnp.float32)  # [G, N_pad]
    cnt = jnp.sum(mask, axis=1, keepdims=True)                                  # [G, 1]
    batch_col = batch_pad[:, None]                                              # [N_pad, 1]

    # Fused head weights: [attention block | classifier] per pooled repr.
    wat1 = params["att"]["W1"]                                     # [3H, H]
    watm, watx, wata = wat1[:h], wat1[h:2 * h], wat1[2 * h:]

    def head_w(w_att, w_cls):
        return jnp.concatenate(
            [_pad2(w_att, h_pad, h_pad), _pad2(w_cls, h_pad, c)], axis=1)

    whm = head_w(watm, params["cls_mean"][0])
    whx = head_w(watx, params["cls_max"][0])
    wha = head_w(wata, params["cls_add"][0])
    bm, bx, ba = (params["cls_mean"][1], params["cls_max"][1], params["cls_add"][1])
    bat1 = _pad2(params["att"]["b1"], 1, h_pad)
    wat2 = _pad2(params["att"]["W2"], h_pad, 3)
    bat2 = params["att"]["b2"]

    # --- pooling + heads kernel (single lane-dense fused output) ---
    g_scratch = max(_round_up(g, 8), 8)
    vmem = pl.BlockSpec(memory_space=pltpu.MemorySpace.VMEM)
    kernel = functools.partial(pool_head_kernel, num_graphs=g, num_classes=c,
                               hidden_pad=h_pad, out_pad=OUT_PAD)
    fused = pl.pallas_call(
        kernel,
        out_shape=jax.ShapeDtypeStruct((g, OUT_PAD), jnp.float32),
        in_specs=[vmem] * 13,
        out_specs=vmem,
        scratch_shapes=[pltpu.VMEM((g_scratch, h_pad), jnp.float32)],
        compiler_params=pltpu.CompilerParams(vmem_limit_bytes=32 << 20),
    )(mask, cnt, batch_col, h3, whm, whx, wha, bm, bx, ba, bat1, wat2, bat2)

    ens = fused[:, 0:c]
    lm = fused[:, c:2 * c]
    lx = fused[:, 2 * c:3 * c]
    la = fused[:, 3 * c:4 * c]
    aw = fused[:, 4 * c:4 * c + 3]
    return ens, lm, lx, la, aw


if __name__ == "__main__":
    # small, module-consistent shapes
    N, G = 16, 2                      # 16 nodes, 2 graphs (8 nodes each)
    input_dim, hidden_dim, num_classes = 8, 32, 4

    key = jax.random.PRNGKey(0)
    params = init_params(key, input_dim, hidden_dim, num_classes)

    # node "features" are embedding indices (only index 0 exists)
    x_idx = jnp.zeros((N,), jnp.int32)
    # batch assignment: first 8 nodes -> graph 0, next 8 -> graph 1
    batch = jnp.concatenate([jnp.zeros(8, jnp.int32), jnp.ones(8, jnp.int32)])
    # deterministic edges: bidirectional ring inside each graph
    srcs, dsts = [], []
    for gi in range(G):
        base = gi * 8
        for i in range(8):
            a, b = base + i, base + (i + 1) % 8
            srcs += [a, b]
            dsts += [b, a]
    edge_index = jnp.array([srcs, dsts], dtype=jnp.int32)   # [2, E]

    outs = adaptive_ensemble_gnn(params, x_idx, edge_index, batch, G, num_classes)
    outs = jax.block_until_ready(outs)
    ens, lm, lx, la, aw = outs
    assert ens.shape == (G, num_classes) and aw.shape == (G, 3)
    assert bool(jnp.all(jnp.isfinite(ens)))
    print("KERNEL_OK")
</pallas_src>

<mosaic_0001>
module attributes {stable_mosaic.version = 11 : i64} {
  func.func @gin_layer_kernel(%arg0: i32, %arg1: memref<128x128xbf16, #tpu.memory_space<vmem>>, %arg2: memref<128x128xf32, #tpu.memory_space<vmem>>, %arg3: memref<128x128xf32, #tpu.memory_space<vmem>>, %arg4: memref<1x128xf32, #tpu.memory_space<vmem>>, %arg5: memref<128x128xf32, #tpu.memory_space<vmem>>, %arg6: memref<1x128xf32, #tpu.memory_space<vmem>>, %arg7: memref<128x128xf32, #tpu.memory_space<vmem>>) attributes {dimension_semantics = [#tpu.dimension_semantics<parallel>], iteration_bounds = array<i64: 1>, scalar_prefetch = 0 : i64, scratch_operands = 0 : i64, tpu.core_type = #tpu.core_type<tc>, window_params = [{transform_indices = @transform_0, window_bounds = array<i64: 128, 128>}, {pipeline_mode = #tpu.pipeline_mode<synchronous>, transform_indices = @transform_1, window_bounds = array<i64: 128, 128>}, {pipeline_mode = #tpu.pipeline_mode<synchronous>, transform_indices = @transform_2, window_bounds = array<i64: 128, 128>}, {pipeline_mode = #tpu.pipeline_mode<synchronous>, transform_indices = @transform_3, window_bounds = array<i64: 1, 128>}, {pipeline_mode = #tpu.pipeline_mode<synchronous>, transform_indices = @transform_4, window_bounds = array<i64: 128, 128>}, {pipeline_mode = #tpu.pipeline_mode<synchronous>, transform_indices = @transform_5, window_bounds = array<i64: 1, 128>}, {transform_indices = @transform_6, window_bounds = array<i64: 128, 128>}]} {
    %c0 = arith.constant 0 : index
    %c0_0 = arith.constant 0 : index
    %0 = vector.load %arg1[%c0, %c0_0] : memref<128x128xbf16, #tpu.memory_space<vmem>>, vector<128x128xbf16>
    %1 = arith.extf %0 : vector<128x128xbf16> to vector<128x128xf32>
    %c0_1 = arith.constant 0 : index
    %c0_2 = arith.constant 0 : index
    %2 = vector.load %arg2[%c0_1, %c0_2] : memref<128x128xf32, #tpu.memory_space<vmem>>, vector<128x128xf32>
    %cst = arith.constant dense<0.000000e+00> : vector<128x128xf32>
    %3 = tpu.matmul %1, %2, %cst {dimension_numbers = #tpu.dot_dimension_numbers<[1], [0], [0], [1], [0, 0, 1, 1], [], []>} : vector<128x128xf32>, vector<128x128xf32>, vector<128x128xf32> -> vector<128x128xf32>
    %c0_3 = arith.constant 0 : index
    %c0_4 = arith.constant 0 : index
    %4 = vector.load %arg3[%c0_3, %c0_4] : memref<128x128xf32, #tpu.memory_space<vmem>>, vector<128x128xf32>
    %cst_5 = arith.constant dense<0.000000e+00> : vector<128x128xf32>
    %5 = tpu.matmul %3, %4, %cst_5 {dimension_numbers = #tpu.dot_dimension_numbers<[1], [0], [0], [1], [0, 0, 1, 1], [], []>} : vector<128x128xf32>, vector<128x128xf32>, vector<128x128xf32> -> vector<128x128xf32>
    %c0_6 = arith.constant 0 : index
    %c0_7 = arith.constant 0 : index
    %6 = vector.load %arg4[%c0_6, %c0_7] : memref<1x128xf32, #tpu.memory_space<vmem>>, vector<1x128xf32>
    %7 = vector.broadcast %6 : vector<1x128xf32> to vector<128x128xf32>
    %8 = arith.addf %5, %7 : vector<128x128xf32>
    %cst_8 = arith.constant 0.000000e+00 : f32
    %9 = vector.broadcast %cst_8 : f32 to vector<128x128xf32>
    %10 = arith.maximumf %8, %9 : vector<128x128xf32>
    %c0_9 = arith.constant 0 : index
    %c0_10 = arith.constant 0 : index
    %11 = vector.load %arg5[%c0_9, %c0_10] : memref<128x128xf32, #tpu.memory_space<vmem>>, vector<128x128xf32>
    %cst_11 = arith.constant dense<0.000000e+00> : vector<128x128xf32>
    %12 = tpu.matmul %10, %11, %cst_11 {dimension_numbers = #tpu.dot_dimension_numbers<[1], [0], [0], [1], [0, 0, 1, 1], [], []>} : vector<128x128xf32>, vector<128x128xf32>, vector<128x128xf32> -> vector<128x128xf32>
    %c0_12 = arith.constant 0 : index
    %c0_13 = arith.constant 0 : index
    %13 = vector.load %arg6[%c0_12, %c0_13] : memref<1x128xf32, #tpu.memory_space<vmem>>, vector<1x128xf32>
    %14 = vector.broadcast %13 : vector<1x128xf32> to vector<128x128xf32>
    %15 = arith.addf %12, %14 : vector<128x128xf32>
    %c0_14 = arith.constant 0 : index
    %c0_15 = arith.constant 0 : index
    %16 = vector.load %arg7[%c0_14, %c0_15] : memref<128x128xf32, #tpu.memory_space<vmem>>, vector<128x128xf32>
    tpu.vector_store %arg7[%c0_14, %c0_15], %15 {strides = array<i32>} : memref<128x128xf32, #tpu.memory_space<vmem>>, vector<128x128xf32>,
    return
  }
  func.func @transform_0(%arg0: i32) -> (i32, i32) {
    %c0_i32 = arith.constant 0 : i32
    %c0_i32_0 = arith.constant 0 : i32
    return %arg0, %c0_i32 : i32, i32
  }
  func.func @transform_1(%arg0: i32) -> (i32, i32) {
    %c0_i32 = arith.constant 0 : i32
    %c0_i32_0 = arith.constant 0 : i32
    %c0_i32_1 = arith.constant 0 : i32
    return %c0_i32, %c0_i32_0 : i32, i32
  }
  func.func @transform_2(%arg0: i32) -> (i32, i32) {
    %c0_i32 = arith.constant 0 : i32
    %c0_i32_0 = arith.constant 0 : i32
    %c0_i32_1 = arith.constant 0 : i32
    return %c0_i32, %c0_i32_0 : i32, i32
  }
  func.func @transform_3(%arg0: i32) -> (i32, i32) {
    %c0_i32 = arith.constant 0 : i32
    %c0_i32_0 = arith.constant 0 : i32
    %c0_i32_1 = arith.constant 0 : i32
    return %c0_i32, %c0_i32_0 : i32, i32
  }
  func.func @transform_4(%arg0: i32) -> (i32, i32) {
    %c0_i32 = arith.constant 0 : i32
    %c0_i32_0 = arith.constant 0 : i32
    %c0_i32_1 = arith.constant 0 : i32
    return %c0_i32, %c0_i32_0 : i32, i32
  }
  func.func @transform_5(%arg0: i32) -> (i32, i32) {
    %c0_i32 = arith.constant 0 : i32
    %c0_i32_0 = arith.constant 0 : i32
    %c0_i32_1 = arith.constant 0 : i32
    return %c0_i32, %c0_i32_0 : i32, i32
  }
  func.func @transform_6(%arg0: i32) -> (i32, i32) {
    %c0_i32 = arith.constant 0 : i32
    %c0_i32_0 = arith.constant 0 : i32
    return %arg0, %c0_i32 : i32, i32
  }
}

</mosaic_0001>

<llo_original>
// kernel: tpu_custom_call.1
$region0: #{tpu_custom_call.1}
  #allocation0 [shape = 'u32[]', space=smem, size = 0x4, offset = 0x4, fixed_abs, tag = 'smem constant byte address 0x4 - core index']
  #allocation1 [shape = 'u32[144,128]{1,0:T(1,128)}', space=vmem, size = 0x12000, scoped, tag = 'internal scratch']
  %s0 = inlined_call_operand.hbm [shape: bf16[128,128], index: 0, kind: input, shape index: {}]
  %s1 = inlined_call_operand.hbm [shape: f32[128,128], index: 1, kind: input, shape index: {}]
  %s2 = inlined_call_operand.hbm [shape: f32[128,128], index: 2, kind: input, shape index: {}]
  %s3 = inlined_call_operand.vmem [shape: f32[1,128], index: 3, kind: input, shape index: {}]
  %s4 = inlined_call_operand.hbm [shape: f32[128,128], index: 4, kind: input, shape index: {}]
  %s5 = inlined_call_operand.vmem [shape: f32[1,128], index: 5, kind: input, shape index: {}]
  %s6 = inlined_call_operand.hbm [shape: f32[128,128], index: 6, kind: output, shape index: {}]
  %s7 = sld [smem:[#allocation0]]
  $region50: #{tpu_custom_call.1} parent=0
    _
  %s9 = ssub.s32 1, %s7
  %s10 = scalar_select 0, %s9, %s7
  $region1: #{tpu_custom_call.1} parent=0
    #allocation2 [shape = 'u8[32768]{0}', space=vmem, size = 0x8000, scoped, tag = 'input window, operand 0, single buffered']
    #allocation3 [shape = 's32[1]{0}', space=sflag, size = 0x4, scoped, tag = 'scoped memory for tpu_custom_call.1']
    #allocation4 [shape = 's32[1]{0}', space=sflag, size = 0x4, scoped, tag = 'scoped memory for tpu_custom_call.1']
    #allocation5 [shape = 'u8[65536]{0}', space=vmem, size = 0x10000, scoped, tag = 'input window, operand 1, single buffered']
    #allocation6 [shape = 's32[1]{0}', space=sflag, size = 0x4, scoped, tag = 'scoped memory for tpu_custom_call.1']
    #allocation7 [shape = 'u8[65536]{0}', space=vmem, size = 0x10000, scoped, tag = 'input window, operand 2, single buffered']
    #allocation8 [shape = 'u8[65536]{0}', space=vmem, size = 0x10000, scoped, tag = 'input window, operand 4, single buffered']
    #allocation9 [shape = 's32[1]{0}', space=sflag, size = 0x4, scoped, tag = 'scoped memory for tpu_custom_call.1']
    #allocation10 [shape = 'u8[65536]{0}', space=vmem, size = 0x10000, scoped, tag = 'output window, operand 0, single buffered']
    %11 = vsyncpa [#allocation3], 0
    %12 = vsyncpa [#allocation6], 0
    %13 = vsyncpa [#allocation9], 0
    %14 = vsyncpa [#allocation4], 0
    // Predicated region
    $region2: #{tpu_custom_call.1} parent=1 // pred_check
      _
    $region3: #{tpu_custom_call.1} parent=1 // pred_check_branch
      %16 = sbr.rel (0) target = $region5
    $region4: #{tpu_custom_call.1} parent=1 // pred_region
      %s18 = ssub.s32 1024, 1024
      %19 = vsyncadd [#allocation3], %s18
      %s20 = sshll.u32 [#allocation2], 4
      %s21 = int_to_ptr.vmem [resolvable:$true] %s20
      %26 = dma.hbm_to_vmem [thread:$0]  %s0, 1024, %s21, [#allocation3], 64, 64, 4
    $region5: #{tpu_custom_call.1} parent=1 // pred_fallthru
      _
    // Predicated region
    $region6: #{tpu_custom_call.1} parent=1 // pred_check
      _
    $region7: #{tpu_custom_call.1} parent=1 // pred_check_branch
      %28 = sbr.rel (0) target = $region9
    $region8: #{tpu_custom_call.1} parent=1 // pred_region
      %s30 = ssub.s32 2048, 2048
      %31 = vsyncadd [#allocation6], %s30
      %s32 = sshll.u32 [#allocation5], 4
      %s33 = int_to_ptr.vmem [resolvable:$true] %s32
      %38 = dma.hbm_to_vmem [thread:$0]  %s1, 2048, %s33, [#allocation6], 128, 128, 8
    $region9: #{tpu_custom_call.1} parent=1 // pred_fallthru
      _
    // Predicated region
    $region10: #{tpu_custom_call.1} parent=1 // pred_check
      _
    $region11: #{tpu_custom_call.1} parent=1 // pred_check_branch
      %40 = sbr.rel (0) target = $region13
    $region12: #{tpu_custom_call.1} parent=1 // pred_region
      %s42 = ssub.s32 2048, 2048
      %43 = vsyncadd [#allocation6], %s42
      %s44 = sshll.u32 [#allocation7], 4
      %s45 = int_to_ptr.vmem [resolvable:$true] %s44
      %50 = dma.hbm_to_vmem [thread:$0]  %s2, 2048, %s45, [#allocation6], 128, 128, 8
    $region13: #{tpu_custom_call.1} parent=1 // pred_fallthru
      _
    // Predicated region
    $region14: #{tpu_custom_call.1} parent=1 // pred_check
      _
    $region15: #{tpu_custom_call.1} parent=1 // pred_check_branch
      %52 = sbr.rel (0) target = $region17
    $region16: #{tpu_custom_call.1} parent=1 // pred_region
      _
    $region17: #{tpu_custom_call.1} parent=1 // pred_fallthru
      _
    // Predicated region
    $region18: #{tpu_custom_call.1} parent=1 // pred_check
      _
    $region19: #{tpu_custom_call.1} parent=1 // pred_check_branch
      %54 = sbr.rel (0) target = $region21
    $region20: #{tpu_custom_call.1} parent=1 // pred_region
      %s56 = ssub.s32 2048, 2048
      %57 = vsyncadd [#allocation9], %s56
      %s58 = sshll.u32 [#allocation8], 4
      %s59 = int_to_ptr.vmem [resolvable:$true] %s58
      %64 = dma.hbm_to_vmem [thread:$0]  %s4, 2048, %s59, [#allocation9], 128, 128, 8
    $region21: #{tpu_custom_call.1} parent=1 // pred_fallthru
      _
    // Predicated region
    $region22: #{tpu_custom_call.1} parent=1 // pred_check
      _
    $region23: #{tpu_custom_call.1} parent=1 // pred_check_branch
      %66 = sbr.rel (0) target = $region25
    $region24: #{tpu_custom_call.1} parent=1 // pred_region
      _
    $region25: #{tpu_custom_call.1} parent=1 // pred_fallthru
      _
    // Predicated region
    $region26: #{tpu_custom_call.1} parent=1 // pred_check
      _
    $region27: #{tpu_custom_call.1} parent=1 // pred_check_branch
      %68 = sbr.rel (0) target = $region29
    $region28: #{tpu_custom_call.1} parent=1 // pred_region
      %69 = dma.done [#allocation3], 1024
    $region29: #{tpu_custom_call.1} parent=1 // pred_fallthru
      _
    // Predicated region
    $region30: #{tpu_custom_call.1} parent=1 // pred_check
      _
    $region31: #{tpu_custom_call.1} parent=1 // pred_check_branch
      %71 = sbr.rel (0) target = $region33
    $region32: #{tpu_custom_call.1} parent=1 // pred_region
      %72 = dma.done [#allocation6], 2048
    $region33: #{tpu_custom_call.1} parent=1 // pred_fallthru
      _
    // Predicated region
    $region34: #{tpu_custom_call.1} parent=1 // pred_check
      _
    $region35: #{tpu_custom_call.1} parent=1 // pred_check_branch
      %74 = sbr.rel (0) target = $region37
    $region36: #{tpu_custom_call.1} parent=1 // pred_region
      %75 = dma.done [#allocation6], 2048
    $region37: #{tpu_custom_call.1} parent=1 // pred_fallthru
      _
    // Predicated region
    $region38: #{tpu_custom_call.1} parent=1 // pred_check
      _
    $region39: #{tpu_custom_call.1} parent=1 // pred_check_branch
      %77 = sbr.rel (0) target = $region41
    $region40: #{tpu_custom_call.1} parent=1 // pred_region
      %78 = dma.done [#allocation9], 2048
    $region41: #{tpu_custom_call.1} parent=1 // pred_fallthru
      _
    %v79 = vld [vmem:[#allocation2] sm:$0xf]
    %v80 = vld [vmem:[#allocation2 + $0x4] sm:$0xf]
    %v81 = vld [vmem:[#allocation2 + $0x8] sm:$0xf]
    %v82 = vld [vmem:[#allocation2 + $0xc] sm:$0xf]
    %v83 = vld [vmem:[#allocation2 + $0x10] sm:$0xf]
    %v84 = vld [vmem:[#allocation2 + $0x14] sm:$0xf]
    %v85 = vld [vmem:[#allocation2 + $0x18] sm:$0xf]
    %v86 = vld [vmem:[#allocation2 + $0x1c] sm:$0xf]
    %v87 = vld [vmem:[#allocation2 + $0x20] sm:$0xf]
    %v88 = vld [vmem:[#allocation2 + $0x24] sm:$0xf]
    %v89 = vld [vmem:[#allocation2 + $0x28] sm:$0xf]
    %v90 = vld [vmem:[#allocation2 + $0x2c] sm:$0xf]
    %v91 = vld [vmem:[#allocation2 + $0x30] sm:$0xf]
    %v92 = vld [vmem:[#allocation2 + $0x34] sm:$0xf]
    %v93 = vld [vmem:[#allocation2 + $0x38] sm:$0xf]
    %v94 = vld [vmem:[#allocation2 + $0x3c] sm:$0xf]
    %v95 = vunpack.c.l.bf16 %v79
    %v96 = vunpack.c.l.bf16 %v80
    %v97 = vunpack.c.l.bf16 %v81
    %v98 = vunpack.c.l.bf16 %v82
    %v99 = vunpack.c.l.bf16 %v83
    %v100 = vunpack.c.l.bf16 %v84
    %v101 = vunpack.c.l.bf16 %v85
    %v102 = vunpack.c.l.bf16 %v86
    %v103 = vunpack.c.l.bf16 %v87
    %v104 = vunpack.c.l.bf16 %v88
    %v105 = vunpack.c.l.bf16 %v89
    %v106 = vunpack.c.l.bf16 %v90
    %v107 = vunpack.c.l.bf16 %v91
    %v108 = vunpack.c.l.bf16 %v92
    %v109 = vunpack.c.l.bf16 %v93
    %v110 = vunpack.c.l.bf16 %v94
    %v111 = vld [vmem:[#allocation5] sm:$0xff]
    %v112 = vld [vmem:[#allocation5 + $0x8] sm:$0xff]
    %v113 = vld [vmem:[#allocation5 + $0x10] sm:$0xff]
    %v114 = vld [vmem:[#allocation5 + $0x18] sm:$0xff]
    %v115 = vld [vmem:[#allocation5 + $0x20] sm:$0xff]
    %v116 = vld [vmem:[#allocation5 + $0x28] sm:$0xff]
    %v117 = vld [vmem:[#allocation5 + $0x30] sm:$0xff]
    %v118 = vld [vmem:[#allocation5 + $0x38] sm:$0xff]
    %v119 = vld [vmem:[#allocation5 + $0x40] sm:$0xff]
    %v120 = vld [vmem:[#allocation5 + $0x48] sm:$0xff]
    %v121 = vld [vmem:[#allocation5 + $0x50] sm:$0xff]
    %v122 = vld [vmem:[#allocation5 + $0x58] sm:$0xff]
    %v123 = vld [vmem:[#allocation5 + $0x60] sm:$0xff]
    %v124 = vld [vmem:[#allocation5 + $0x68] sm:$0xff]
    %v125 = vld [vmem:[#allocation5 + $0x70] sm:$0xff]
    %v126 = vld [vmem:[#allocation5 + $0x78] sm:$0xff]
    %127 = vmatprep.subr.mxu0 0.0
    %128 = vmatpush1.msra.mxu0 %v126
    %129 = vmatprep.subr.mxu0 0.0
    %130 = vmatpush1.msra.mxu0 %v125
    %131 = vmatprep.subr.mxu0 0.0
    %132 = vmatpush1.msra.mxu0 %v124
    %133 = vmatprep.subr.mxu0 0.0
    %134 = vmatpush1.msra.mxu0 %v123
    %135 = vmatprep.subr.mxu0 0.0
    %136 = vmatpush1.msra.mxu0 %v122
    %137 = vmatprep.subr.mxu0 0.0
    %138 = vmatpush1.msra.mxu0 %v121
    %139 = vmatprep.subr.mxu0 0.0
    %140 = vmatpush1.msra.mxu0 %v120
    %141 = vmatprep.subr.mxu0 0.0
    %142 = vmatpush1.msra.mxu0 %v119
    %143 = vmatprep.subr.mxu0 0.0
    %144 = vmatpush1.msra.mxu0 %v118
    %145 = vmatprep.subr.mxu0 0.0
    %146 = vmatpush1.msra.mxu0 %v117
    %147 = vmatprep.subr.mxu0 0.0
    %148 = vmatpush1.msra.mxu0 %v116
    %149 = vmatprep.subr.mxu0 0.0
    %150 = vmatpush1.msra.mxu0 %v115
    %151 = vmatprep.subr.mxu0 0.0
    %152 = vmatpush1.msra.mxu0 %v114
    %153 = vmatprep.subr.mxu0 0.0
    %154 = vmatpush1.msra.mxu0 %v113
    %155 = vmatprep.subr.mxu0 0.0
    %156 = vmatpush1.msra.mxu0 %v112
    %157 = vmatprep.subr.mxu0 0.0
    %158 = vmatpush1.msra.mxu0 %v111
    %159 = vmatprep.subr.mxu0 0.0
    %160 = vmatpush2.msra.mxu0 0.0
    %161 = vmatprep.subr.mxu0 0.0
    %162 = vmatpush2.msra.mxu0 0.0
    %163 = vmatprep.subr.mxu0 0.0
    %164 = vmatpush2.msra.mxu0 0.0
    %165 = vmatprep.subr.mxu0 0.0
    %166 = vmatpush2.msra.mxu0 0.0
    %167 = vmatprep.subr.mxu0 0.0
    %168 = vmatpush2.msra.mxu0 0.0
    %169 = vmatprep.subr.mxu0 0.0
    %170 = vmatpush2.msra.mxu0 0.0
    %171 = vmatprep.subr.mxu0 0.0
    %172 = vmatpush2.msra.mxu0 0.0
    %173 = vmatprep.subr.mxu0 0.0
    %174 = vmatpush2.msra.mxu0 0.0
    %175 = vmatprep.subr.mxu0 0.0
    %176 = vmatpush2.msra.mxu0 0.0
    %177 = vmatprep.subr.mxu0 0.0
    %178 = vmatpush2.msra.mxu0 0.0
    %179 = vmatprep.subr.mxu0 0.0
    %180 = vmatpush2.msra.mxu0 0.0
    %181 = vmatprep.subr.mxu0 0.0
    %182 = vmatpush2.msra.mxu0 0.0
    %183 = vmatprep.subr.mxu0 0.0
    %184 = vmatpush2.msra.mxu0 0.0
    %185 = vmatprep.subr.mxu0 0.0
    %186 = vmatpush2.msra.mxu0 0.0
    %187 = vmatprep.subr.mxu0 0.0
    %188 = vmatpush2.msra.mxu0 0.0
    %189 = vmatprep.subr.mxu0 0.0
    %190 = vmatpush2.msra.mxu0 0.0
    %191 = vmatprep.mubr.f32.mxu0 0.0
    %192 = vmatmul.mubr.f32.gmra.mxu0 %v95
    %v193 = vpop.f32.mrf.mxu0
    %v194 = vadd.f32 0.0, %v193
    %v195 = vpop.f32.mrf.mxu0
    %196 = vmatprep.mubr.f32.mxu0 0.0
    %197 = vmatmul.mubr.f32.gmra.mxu0 %v96
    %v198 = vpop.f32.mrf.mxu0
    %v199 = vadd.f32 0.0, %v198
    %v200 = vpop.f32.mrf.mxu0
    %201 = vmatprep.mubr.f32.mxu0 0.0
    %202 = vmatmul.mubr.f32.gmra.mxu0 %v97
    %v203 = vpop.f32.mrf.mxu0
    %v204 = vadd.f32 0.0, %v203
    %v205 = vpop.f32.mrf.mxu0
    %206 = vmatprep.mubr.f32.mxu0 0.0
    %207 = vmatmul.mubr.f32.gmra.mxu0 %v98
    %v208 = vpop.f32.mrf.mxu0
    %v209 = vadd.f32 0.0, %v208
    %v210 = vpop.f32.mrf.mxu0
    %211 = vmatprep.mubr.f32.mxu0 0.0
    %212 = vmatmul.mubr.f32.gmra.mxu0 %v99
    %v213 = vpop.f32.mrf.mxu0
    %v214 = vadd.f32 0.0, %v213
    %v215 = vpop.f32.mrf.mxu0
    %216 = vmatprep.mubr.f32.mxu0 0.0
    %217 = vmatmul.mubr.f32.gmra.mxu0 %v100
    %v218 = vpop.f32.mrf.mxu0
    %v219 = vadd.f32 0.0, %v218
    %v220 = vpop.f32.mrf.mxu0
    %221 = vmatprep.mubr.f32.mxu0 0.0
    %222 = vmatmul.mubr.f32.gmra.mxu0 %v101
    %v223 = vpop.f32.mrf.mxu0
    %v224 = vadd.f32 0.0, %v223
    %v225 = vpop.f32.mrf.mxu0
    %226 = vmatprep.mubr.f32.mxu0 0.0
    %227 = vmatmul.mubr.f32.gmra.mxu0 %v102
    %v228 = vpop.f32.mrf.mxu0
    %v229 = vadd.f32 0.0, %v228
    %v230 = vpop.f32.mrf.mxu0
    %231 = vmatprep.mubr.f32.mxu0 0.0
    %232 = vmatmul.mubr.f32.gmra.mxu0 %v103
    %v233 = vpop.f32.mrf.mxu0
    %v234 = vadd.f32 0.0, %v233
    %v235 = vpop.f32.mrf.mxu0
    %236 = vmatprep.mubr.f32.mxu0 0.0
    %237 = vmatmul.mubr.f32.gmra.mxu0 %v104
    %v238 = vpop.f32.mrf.mxu0
    %v239 = vadd.f32 0.0, %v238
    %v240 = vpop.f32.mrf.mxu0
    %241 = vmatprep.mubr.f32.mxu0 0.0
    %242 = vmatmul.mubr.f32.gmra.mxu0 %v105
    %v243 = vpop.f32.mrf.mxu0
    %v244 = vadd.f32 0.0, %v243
    %v245 = vpop.f32.mrf.mxu0
    %246 = vmatprep.mubr.f32.mxu0 0.0
    %247 = vmatmul.mubr.f32.gmra.mxu0 %v106
    %v248 = vpop.f32.mrf.mxu0
    %v249 = vadd.f32 0.0, %v248
    %v250 = vpop.f32.mrf.mxu0
    %251 = vmatprep.mubr.f32.mxu0 0.0
    %252 = vmatmul.mubr.f32.gmra.mxu0 %v107
    %v253 = vpop.f32.mrf.mxu0
    %v254 = vadd.f32 0.0, %v253
    %v255 = vpop.f32.mrf.mxu0
    %256 = vmatprep.mubr.f32.mxu0 0.0
    %257 = vmatmul.mubr.f32.gmra.mxu0 %v108
    %v258 = vpop.f32.mrf.mxu0
    %v259 = vadd.f32 0.0, %v258
    %v260 = vpop.f32.mrf.mxu0
    %261 = vmatprep.mubr.f32.mxu0 0.0
    %262 = vmatmul.mubr.f32.gmra.mxu0 %v109
    %v263 = vpop.f32.mrf.mxu0
    %v264 = vadd.f32 0.0, %v263
    %v265 = vpop.f32.mrf.mxu0
    %266 = vmatprep.mubr.f32.mxu0 0.0
    %267 = vmatmul.mubr.f32.gmra.mxu0 %v110
    %v268 = vpop.f32.mrf.mxu0
    %v269 = vadd.f32 0.0, %v268
    %v270 = vpop.f32.mrf.mxu0
    %271 = vdwg.mxu0
    %v272 = vld [vmem:[#allocation7] sm:$0xff]
    %v273 = vld [vmem:[#allocation7 + $0x8] sm:$0xff]
    %v274 = vld [vmem:[#allocation7 + $0x10] sm:$0xff]
    %v275 = vld [vmem:[#allocation7 + $0x18] sm:$0xff]
    %v276 = vld [vmem:[#allocation7 + $0x20] sm:$0xff]
    %v277 = vld [vmem:[#allocation7 + $0x28] sm:$0xff]
    %v278 = vld [vmem:[#allocation7 + $0x30] sm:$0xff]
    %v279 = vld [vmem:[#allocation7 + $0x38] sm:$0xff]
    %v280 = vld [vmem:[#allocation7 + $0x40] sm:$0xff]
    %v281 = vld [vmem:[#allocation7 + $0x48] sm:$0xff]
    %v282 = vld [vmem:[#allocation7 + $0x50] sm:$0xff]
    %v283 = vld [vmem:[#allocation7 + $0x58] sm:$0xff]
    %v284 = vld [vmem:[#allocation7 + $0x60] sm:$0xff]
    %v285 = vld [vmem:[#allocation7 + $0x68] sm:$0xff]
    %v286 = vld [vmem:[#allocation7 + $0x70] sm:$0xff]
    %v287 = vld [vmem:[#allocation7 + $0x78] sm:$0xff]
    %v288 = vld [vmem:[%s3] sm:$0x1]
    %v290 = vlaneseq
    %v291 = vshrl.u32 %v290, 7
    %v292 = vsub.s32 0, %v291
    %v293 = vrot.slane %v288, %v292
    %295 = vmatprep.subr.mxu0 0.0
    %296 = vmatpush1.msra.mxu0 %v287
    %297 = vmatprep.subr.mxu0 0.0
    %298 = vmatpush1.msra.mxu0 %v286
    %299 = vmatprep.subr.mxu0 0.0
    %300 = vmatpush1.msra.mxu0 %v285
    %301 = vmatprep.subr.mxu0 0.0
    %302 = vmatpush1.msra.mxu0 %v284
    %303 = vmatprep.subr.mxu0 0.0
    %304 = vmatpush1.msra.mxu0 %v283
    %305 = vmatprep.subr.mxu0 0.0
    %306 = vmatpush1.msra.mxu0 %v282
    %307 = vmatprep.subr.mxu0 0.0
    %308 = vmatpush1.msra.mxu0 %v281
    %309 = vmatprep.subr.mxu0 0.0
    %310 = vmatpush1.msra.mxu0 %v280
    %311 = vmatprep.subr.mxu0 0.0
    %312 = vmatpush1.msra.mxu0 %v279
    %313 = vmatprep.subr.mxu0 0.0
    %314 = vmatpush1.msra.mxu0 %v278
    %315 = vmatprep.subr.mxu0 0.0
    %316 = vmatpush1.msra.mxu0 %v277
    %317 = vmatprep.subr.mxu0 0.0
    %318 = vmatpush1.msra.mxu0 %v276
    %319 = vmatprep.subr.mxu0 0.0
    %320 = vmatpush1.msra.mxu0 %v275
    %321 = vmatprep.subr.mxu0 0.0
    %322 = vmatpush1.msra.mxu0 %v274
    %323 = vmatprep.subr.mxu0 0.0
    %324 = vmatpush1.msra.mxu0 %v273
    %325 = vmatprep.subr.mxu0 0.0
    %326 = vmatpush1.msra.mxu0 %v272
    %327 = vmatprep.subr.mxu0 0.0
    %328 = vmatpush2.msra.mxu0 0.0
    %329 = vmatprep.subr.mxu0 0.0
    %330 = vmatpush2.msra.mxu0 0.0
    %331 = vmatprep.subr.mxu0 0.0
    %332 = vmatpush2.msra.mxu0 0.0
    %333 = vmatprep.subr.mxu0 0.0
    %334 = vmatpush2.msra.mxu0 0.0
    %335 = vmatprep.subr.mxu0 0.0
    %336 = vmatpush2.msra.mxu0 0.0
    %337 = vmatprep.subr.mxu0 0.0
    %338 = vmatpush2.msra.mxu0 0.0
    %339 = vmatprep.subr.mxu0 0.0
    %340 = vmatpush2.msra.mxu0 0.0
    %341 = vmatprep.subr.mxu0 0.0
    %342 = vmatpush2.msra.mxu0 0.0
    %343 = vmatprep.subr.mxu0 0.0
    %344 = vmatpush2.msra.mxu0 0.0
    %345 = vmatprep.subr.mxu0 0.0
    %346 = vmatpush2.msra.mxu0 0.0
    %347 = vmatprep.subr.mxu0 0.0
    %348 = vmatpush2.msra.mxu0 0.0
    %349 = vmatprep.subr.mxu0 0.0
    %350 = vmatpush2.msra.mxu0 0.0
    %351 = vmatprep.subr.mxu0 0.0
    %352 = vmatpush2.msra.mxu0 0.0
    %353 = vmatprep.subr.mxu0 0.0
    %354 = vmatpush2.msra.mxu0 0.0
    %355 = vmatprep.subr.mxu0 0.0
    %356 = vmatpush2.msra.mxu0 0.0
    %357 = vmatprep.subr.mxu0 0.0
    %358 = vmatpush2.msra.mxu0 0.0
    %359 = vmatprep.mubr.f32.mxu0 0.0
    %360 = vmatmul.mubr.f32.gmra.mxu0 %v194
    %v361 = vpop.f32.mrf.mxu0
    %v362 = vadd.f32 %v293, %v361
    %v363 = vpop.f32.mrf.mxu0
    %364 = vmatprep.mubr.f32.mxu0 0.0
    %365 = vmatmul.mubr.f32.gmra.mxu0 %v199
    %v366 = vpop.f32.mrf.mxu0
    %v367 = vadd.f32 %v293, %v366
    %v368 = vpop.f32.mrf.mxu0
    %369 = vmatprep.mubr.f32.mxu0 0.0
    %370 = vmatmul.mubr.f32.gmra.mxu0 %v204
    %v371 = vpop.f32.mrf.mxu0
    %v372 = vadd.f32 %v293, %v371
    %v373 = vpop.f32.mrf.mxu0
    %374 = vmatprep.mubr.f32.mxu0 0.0
    %375 = vmatmul.mubr.f32.gmra.mxu0 %v209
    %v376 = vpop.f32.mrf.mxu0
    %v377 = vadd.f32 %v293, %v376
    %v378 = vpop.f32.mrf.mxu0
    %379 = vmatprep.mubr.f32.mxu0 0.0
    %380 = vmatmul.mubr.f32.gmra.mxu0 %v214
    %v381 = vpop.f32.mrf.mxu0
    %v382 = vadd.f32 %v293, %v381
    %v383 = vpop.f32.mrf.mxu0
    %384 = vmatprep.mubr.f32.mxu0 0.0
    %385 = vmatmul.mubr.f32.gmra.mxu0 %v219
    %v386 = vpop.f32.mrf.mxu0
    %v387 = vadd.f32 %v293, %v386
    %v388 = vpop.f32.mrf.mxu0
    %389 = vmatprep.mubr.f32.mxu0 0.0
    %390 = vmatmul.mubr.f32.gmra.mxu0 %v224
    %v391 = vpop.f32.mrf.mxu0
    %v392 = vadd.f32 %v293, %v391
    %v393 = vpop.f32.mrf.mxu0
    %394 = vmatprep.mubr.f32.mxu0 0.0
    %395 = vmatmul.mubr.f32.gmra.mxu0 %v229
    %v396 = vpop.f32.mrf.mxu0
    %v397 = vadd.f32 %v293, %v396
    %v398 = vpop.f32.mrf.mxu0
    %399 = vmatprep.mubr.f32.mxu0 0.0
    %400 = vmatmul.mubr.f32.gmra.mxu0 %v234
    %v401 = vpop.f32.mrf.mxu0
    %v402 = vadd.f32 %v293, %v401
    %v403 = vpop.f32.mrf.mxu0
    %404 = vmatprep.mubr.f32.mxu0 0.0
    %405 = vmatmul.mubr.f32.gmra.mxu0 %v239
    %v406 = vpop.f32.mrf.mxu0
    %v407 = vadd.f32 %v293, %v406
    %v408 = vpop.f32.mrf.mxu0
    %409 = vmatprep.mubr.f32.mxu0 0.0
    %410 = vmatmul.mubr.f32.gmra.mxu0 %v244
    %v411 = vpop.f32.mrf.mxu0
    %v412 = vadd.f32 %v293, %v411
    %v413 = vpop.f32.mrf.mxu0
    %414 = vmatprep.mubr.f32.mxu0 0.0
    %415 = vmatmul.mubr.f32.gmra.mxu0 %v249
    %v416 = vpop.f32.mrf.mxu0
    %v417 = vadd.f32 %v293, %v416
    %v418 = vpop.f32.mrf.mxu0
    %419 = vmatprep.mubr.f32.mxu0 0.0
    %420 = vmatmul.mubr.f32.gmra.mxu0 %v254
    %v421 = vpop.f32.mrf.mxu0
    %v422 = vadd.f32 %v293, %v421
    %v423 = vpop.f32.mrf.mxu0
    %424 = vmatprep.mubr.f32.mxu0 0.0
    %425 = vmatmul.mubr.f32.gmra.mxu0 %v259
    %v426 = vpop.f32.mrf.mxu0
    %v427 = vadd.f32 %v293, %v426
    %v428 = vpop.f32.mrf.mxu0
    %429 = vmatprep.mubr.f32.mxu0 0.0
    %430 = vmatmul.mubr.f32.gmra.mxu0 %v264
    %v431 = vpop.f32.mrf.mxu0
    %v432 = vadd.f32 %v293, %v431
    %v433 = vpop.f32.mrf.mxu0
    %434 = vmatprep.mubr.f32.mxu0 0.0
    %435 = vmatmul.mubr.f32.gmra.mxu0 %v269
    %v436 = vpop.f32.mrf.mxu0
    %v437 = vadd.f32 %v293, %v436
    %v438 = vpop.f32.mrf.mxu0
    %439 = vdwg.mxu0
    %v440 = vmax.f32 %v362, 0.0
    %v441 = vmax.f32 %v367, 0.0
    %v442 = vmax.f32 %v372, 0.0
    %v443 = vmax.f32 %v377, 0.0
    %v444 = vmax.f32 %v382, 0.0
    %v445 = vmax.f32 %v387, 0.0
    %v446 = vmax.f32 %v392, 0.0
    %v447 = vmax.f32 %v397, 0.0
    %v448 = vmax.f32 %v402, 0.0
    %v449 = vmax.f32 %v407, 0.0
    %v450 = vmax.f32 %v412, 0.0
    %v451 = vmax.f32 %v417, 0.0
    %v452 = vmax.f32 %v422, 0.0
    %v453 = vmax.f32 %v427, 0.0
    %v454 = vmax.f32 %v432, 0.0
    %v455 = vmax.f32 %v437, 0.0
    %v456 = vld [vmem:[#allocation8] sm:$0xff]
    %v457 = vld [vmem:[#allocation8 + $0x8] sm:$0xff]
    %v458 = vld [vmem:[#allocation8 + $0x10] sm:$0xff]
    %v459 = vld [vmem:[#allocation8 + $0x18] sm:$0xff]
    %v460 = vld [vmem:[#allocation8 + $0x20] sm:$0xff]
    %v461 = vld [vmem:[#allocation8 + $0x28] sm:$0xff]
    %v462 = vld [vmem:[#allocation8 + $0x30] sm:$0xff]
    %v463 = vld [vmem:[#allocation8 + $0x38] sm:$0xff]
    %v464 = vld [vmem:[#allocation8 + $0x40] sm:$0xff]
    %v465 = vld [vmem:[#allocation8 + $0x48] sm:$0xff]
    %v466 = vld [vmem:[#allocation8 + $0x50] sm:$0xff]
    %v467 = vld [vmem:[#allocation8 + $0x58] sm:$0xff]
    %v468 = vld [vmem:[#allocation8 + $0x60] sm:$0xff]
    %v469 = vld [vmem:[#allocation8 + $0x68] sm:$0xff]
    %v470 = vld [vmem:[#allocation8 + $0x70] sm:$0xff]
    %v471 = vld [vmem:[#allocation8 + $0x78] sm:$0xff]
    %v472 = vld [vmem:[%s5] sm:$0x1]
    %v474 = vlaneseq
    %v475 = vshrl.u32 %v474, 7
    %v476 = vsub.s32 0, %v475
    %v477 = vrot.slane %v472, %v476
    %479 = vmatprep.subr.mxu0 0.0
    %480 = vmatpush1.msra.mxu0 %v471
    %481 = vmatprep.subr.mxu0 0.0
    %482 = vmatpush1.msra.mxu0 %v470
    %483 = vmatprep.subr.mxu0 0.0
    %484 = vmatpush1.msra.mxu0 %v469
    %485 = vmatprep.subr.mxu0 0.0
    %486 = vmatpush1.msra.mxu0 %v468
    %487 = vmatprep.subr.mxu0 0.0
    %488 = vmatpush1.msra.mxu0 %v467
    %489 = vmatprep.subr.mxu0 0.0
    %490 = vmatpush1.msra.mxu0 %v466
    %491 = vmatprep.subr.mxu0 0.0
    %492 = vmatpush1.msra.mxu0 %v465
    %493 = vmatprep.subr.mxu0 0.0
    %494 = vmatpush1.msra.mxu0 %v464
    %495 = vmatprep.subr.mxu0 0.0
    %496 = vmatpush1.msra.mxu0 %v463
    %497 = vmatprep.subr.mxu0 0.0
    %498 = vmatpush1.msra.mxu0 %v462
    %499 = vmatprep.subr.mxu0 0.0
    %500 = vmatpush1.msra.mxu0 %v461
    %501 = vmatprep.subr.mxu0 0.0
    %502 = vmatpush1.msra.mxu0 %v460
    %503 = vmatprep.subr.mxu0 0.0
    %504 = vmatpush1.msra.mxu0 %v459
    %505 = vmatprep.subr.mxu0 0.0
    %506 = vmatpush1.msra.mxu0 %v458
    %507 = vmatprep.subr.mxu0 0.0
    %508 = vmatpush1.msra.mxu0 %v457
    %509 = vmatprep.subr.mxu0 0.0
    %510 = vmatpush1.msra.mxu0 %v456
    %511 = vmatprep.subr.mxu0 0.0
    %512 = vmatpush2.msra.mxu0 0.0
    %513 = vmatprep.subr.mxu0 0.0
    %514 = vmatpush2.msra.mxu0 0.0
    %515 = vmatprep.subr.mxu0 0.0
    %516 = vmatpush2.msra.mxu0 0.0
    %517 = vmatprep.subr.mxu0 0.0
    %518 = vmatpush2.msra.mxu0 0.0
    %519 = vmatprep.subr.mxu0 0.0
    %520 = vmatpush2.msra.mxu0 0.0
    %521 = vmatprep.subr.mxu0 0.0
    %522 = vmatpush2.msra.mxu0 0.0
    %523 = vmatprep.subr.mxu0 0.0
    %524 = vmatpush2.msra.mxu0 0.0
    %525 = vmatprep.subr.mxu0 0.0
    %526 = vmatpush2.msra.mxu0 0.0
    %527 = vmatprep.subr.mxu0 0.0
    %528 = vmatpush2.msra.mxu0 0.0
    %529 = vmatprep.subr.mxu0 0.0
    %530 = vmatpush2.msra.mxu0 0.0
    %531 = vmatprep.subr.mxu0 0.0
    %532 = vmatpush2.msra.mxu0 0.0
    %533 = vmatprep.subr.mxu0 0.0
    %534 = vmatpush2.msra.mxu0 0.0
    %535 = vmatprep.subr.mxu0 0.0
    %536 = vmatpush2.msra.mxu0 0.0
    %537 = vmatprep.subr.mxu0 0.0
    %538 = vmatpush2.msra.mxu0 0.0
    %539 = vmatprep.subr.mxu0 0.0
    %540 = vmatpush2.msra.mxu0 0.0
    %541 = vmatprep.subr.mxu0 0.0
    %542 = vmatpush2.msra.mxu0 0.0
    %543 = vmatprep.mubr.f32.mxu0 0.0
    %544 = vmatmul.mubr.f32.gmra.mxu0 %v440
    %v545 = vpop.f32.mrf.mxu0
    %v546 = vadd.f32 %v477, %v545
    %v547 = vpop.f32.mrf.mxu0
    %548 = vmatprep.mubr.f32.mxu0 0.0
    %549 = vmatmul.mubr.f32.gmra.mxu0 %v441
    %v550 = vpop.f32.mrf.mxu0
    %v551 = vadd.f32 %v477, %v550
    %v552 = vpop.f32.mrf.mxu0
    %553 = vmatprep.mubr.f32.mxu0 0.0
    %554 = vmatmul.mubr.f32.gmra.mxu0 %v442
    %v555 = vpop.f32.mrf.mxu0
    %v556 = vadd.f32 %v477, %v555
    %v557 = vpop.f32.mrf.mxu0
    %558 = vmatprep.mubr.f32.mxu0 0.0
    %559 = vmatmul.mubr.f32.gmra.mxu0 %v443
    %v560 = vpop.f32.mrf.mxu0
    %v561 = vadd.f32 %v477, %v560
    %v562 = vpop.f32.mrf.mxu0
    %563 = vmatprep.mubr.f32.mxu0 0.0
    %564 = vmatmul.mubr.f32.gmra.mxu0 %v444
    %v565 = vpop.f32.mrf.mxu0
    %v566 = vadd.f32 %v477, %v565
    %v567 = vpop.f32.mrf.mxu0
    %568 = vmatprep.mubr.f32.mxu0 0.0
    %569 = vmatmul.mubr.f32.gmra.mxu0 %v445
    %v570 = vpop.f32.mrf.mxu0
    %v571 = vadd.f32 %v477, %v570
    %v572 = vpop.f32.mrf.mxu0
    %573 = vmatprep.mubr.f32.mxu0 0.0
    %574 = vmatmul.mubr.f32.gmra.mxu0 %v446
    %v575 = vpop.f32.mrf.mxu0
    %v576 = vadd.f32 %v477, %v575
    %v577 = vpop.f32.mrf.mxu0
    %578 = vmatprep.mubr.f32.mxu0 0.0
    %579 = vmatmul.mubr.f32.gmra.mxu0 %v447
    %v580 = vpop.f32.mrf.mxu0
    %v581 = vadd.f32 %v477, %v580
    %v582 = vpop.f32.mrf.mxu0
    %583 = vmatprep.mubr.f32.mxu0 0.0
    %584 = vmatmul.mubr.f32.gmra.mxu0 %v448
    %v585 = vpop.f32.mrf.mxu0
    %v586 = vadd.f32 %v477, %v585
    %v587 = vpop.f32.mrf.mxu0
    %588 = vmatprep.mubr.f32.mxu0 0.0
    %589 = vmatmul.mubr.f32.gmra.mxu0 %v449
    %v590 = vpop.f32.mrf.mxu0
    %v591 = vadd.f32 %v477, %v590
    %v592 = vpop.f32.mrf.mxu0
    %593 = vmatprep.mubr.f32.mxu0 0.0
    %594 = vmatmul.mubr.f32.gmra.mxu0 %v450
    %v595 = vpop.f32.mrf.mxu0
    %v596 = vadd.f32 %v477, %v595
    %v597 = vpop.f32.mrf.mxu0
    %598 = vmatprep.mubr.f32.mxu0 0.0
    %599 = vmatmul.mubr.f32.gmra.mxu0 %v451
    %v600 = vpop.f32.mrf.mxu0
    %v601 = vadd.f32 %v477, %v600
    %v602 = vpop.f32.mrf.mxu0
    %603 = vmatprep.mubr.f32.mxu0 0.0
    %604 = vmatmul.mubr.f32.gmra.mxu0 %v452
    %v605 = vpop.f32.mrf.mxu0
    %v606 = vadd.f32 %v477, %v605
    %v607 = vpop.f32.mrf.mxu0
    %608 = vmatprep.mubr.f32.mxu0 0.0
    %609 = vmatmul.mubr.f32.gmra.mxu0 %v453
    %v610 = vpop.f32.mrf.mxu0
    %v611 = vadd.f32 %v477, %v610
    %v612 = vpop.f32.mrf.mxu0
    %613 = vmatprep.mubr.f32.mxu0 0.0
    %614 = vmatmul.mubr.f32.gmra.mxu0 %v454
    %v615 = vpop.f32.mrf.mxu0
    %v616 = vadd.f32 %v477, %v615
    %v617 = vpop.f32.mrf.mxu0
    %618 = vmatprep.mubr.f32.mxu0 0.0
    %619 = vmatmul.mubr.f32.gmra.mxu0 %v455
    %v620 = vpop.f32.mrf.mxu0
    %v621 = vadd.f32 %v477, %v620
    %v622 = vpop.f32.mrf.mxu0
    %623 = vdwg.mxu0
    %624 = vst [vmem:[#allocation10] sm:$0xff] %v546
    %625 = vst [vmem:[#allocation10 + $0x8] sm:$0xff] %v551
    %626 = vst [vmem:[#allocation10 + $0x10] sm:$0xff] %v556
    %627 = vst [vmem:[#allocation10 + $0x18] sm:$0xff] %v561
    %628 = vst [vmem:[#allocation10 + $0x20] sm:$0xff] %v566
    %629 = vst [vmem:[#allocation10 + $0x28] sm:$0xff] %v571
    %630 = vst [vmem:[#allocation10 + $0x30] sm:$0xff] %v576
    %631 = vst [vmem:[#allocation10 + $0x38] sm:$0xff] %v581
    %632 = vst [vmem:[#allocation10 + $0x40] sm:$0xff] %v586
    %633 = vst [vmem:[#allocation10 + $0x48] sm:$0xff] %v591
    %634 = vst [vmem:[#allocation10 + $0x50] sm:$0xff] %v596
    %635 = vst [vmem:[#allocation10 + $0x58] sm:$0xff] %v601
    %636 = vst [vmem:[#allocation10 + $0x60] sm:$0xff] %v606
    %637 = vst [vmem:[#allocation10 + $0x68] sm:$0xff] %v611
    %638 = vst [vmem:[#allocation10 + $0x70] sm:$0xff] %v616
    %639 = vst [vmem:[#allocation10 + $0x78] sm:$0xff] %v621
    // Predicated region
    $region42: #{tpu_custom_call.1} parent=1 // pred_check
      _
    $region43: #{tpu_custom_call.1} parent=1 // pred_check_branch
      %641 = sbr.rel (0) target = $region45
    $region44: #{tpu_custom_call.1} parent=1 // pred_region
      %s643 = ssub.s32 2048, 2048
      %644 = vsyncadd [#allocation4], %s643
      %s645 = sshll.u32 [#allocation10], 4
      %s646 = int_to_ptr.vmem [resolvable:$true] %s645
      %651 = dma.vmem_to_hbm [thread:$0]  %s646, 2048, %s6, [#allocation4], 128, 128, 8
    $region45: #{tpu_custom_call.1} parent=1 // pred_fallthru
      _
    // Predicated region
    $region46: #{tpu_custom_call.1} parent=1 // pred_check
      _
    $region47: #{tpu_custom_call.1} parent=1 // pred_check_branch
      %653 = sbr.rel (0) target = $region49
    $region48: #{tpu_custom_call.1} parent=1 // pred_region
      %654 = dma.done [#allocation4], 2048
    $region49: #{tpu_custom_call.1} parent=1 // pred_fallthru
      _
    %655 = vsyncpa [#allocation3], 1
    %656 = vsyncpa [#allocation6], 1
    %657 = vsyncpa [#allocation9], 1
    %658 = vsyncpa [#allocation4], 1

</llo_original>
